<compile_context>
chip_gen: v5e
topology: v5e:2x2
jax: 0.10.0
libtpu: 0.0.40
codegen_flags: <defaults>
</compile_context>

<pallas_src>
import functools

import jax
import jax.numpy as jnp
import numpy as np
from jax.experimental import pallas as pl
from jax.experimental.pallas import tpu as pltpu


def _ldam_mdr_kernel(x_ref, tgt_ref, m_ref, w_ref, out_ref, acc_ref, *,
                     s, l, batch, block_b):
    pid = pl.program_id(0)

    @pl.when(pid == 0)
    def _init():
        acc_ref[0] = 0.0   # sum(w_t * ce)
        acc_ref[1] = 0.0   # sum(w_t)
        acc_ref[2] = 0.0   # sum(pred)

    x = x_ref[...].astype(jnp.float32)          # (TB, C)  cast in-kernel
    tgt = tgt_ref[...]                          # (TB, 1) int32
    m_list = m_ref[...].astype(jnp.float32)     # (1, C)
    weight = w_ref[...].astype(jnp.float32)     # (1, C)

    tb, n_cls = x.shape

    # Mask rows past the true batch size (padded last tile) and sanitize them.
    row = pid * block_b + jax.lax.broadcasted_iota(jnp.int32, (tb, 1), 0)
    valid = row < batch                                         # (TB, 1) bool
    x = jnp.where(valid, x, 0.0)

    lane = jax.lax.broadcasted_iota(jnp.int32, (tb, n_cls), 1)
    one_hot = jnp.logical_and(lane == tgt, valid).astype(jnp.float32)

    # Fused target-row extraction (single masked-sum pass per quantity).
    x_t = jnp.sum(one_hot * x, axis=-1, keepdims=True)          # (TB, 1)
    batch_m = jnp.sum(one_hot * m_list, axis=-1, keepdims=True)  # (TB, 1)
    w_t = jnp.sum(one_hot * weight, axis=-1, keepdims=True)      # (TB, 1)

    # Margin subtracted only at the target logit, then stable log-softmax CE.
    scaled = s * (x - batch_m * one_hot)
    mx = jnp.max(scaled, axis=-1, keepdims=True)
    lse = mx + jnp.log(jnp.sum(jnp.exp(scaled - mx), axis=-1, keepdims=True))
    ce = lse - s * (x_t - batch_m)                               # (TB, 1)

    # argmax(x) with first-index tie-break (== argmax of f64 softmax).
    x_max = jnp.max(x, axis=-1, keepdims=True)
    pred = jnp.min(jnp.where(x == x_max, lane, n_cls), axis=-1, keepdims=True)
    pred_f = jnp.where(valid, pred, 0).astype(jnp.float32)

    acc_ref[0] += jnp.sum(w_t * ce)
    acc_ref[1] += jnp.sum(w_t)   # 0/0 possible iff weight[target]==0 for all rows (matches torch)
    acc_ref[2] += jnp.sum(pred_f)

    @pl.when(pid == pl.num_programs(0) - 1)
    def _finalize():
        loss_ce = acc_ref[0] / acc_ref[1]
        mean_pred = acc_ref[2] / jnp.float32(batch)
        out_ref[0, 0] = loss_ce + (l * 0.5) * (0.5 - mean_pred) ** 2


def _choose_block_b(batch, n_classes, itemsize, target_bytes=2 << 20):
    """Batch-tile rows so each logits tile is ~2 MiB (double-buffered ~4 MiB):
    fits v5e's 16 MiB scoped-VMEM default and v7x's 64 MiB physical VMEM."""
    tb = max(1, target_bytes // max(1, n_classes * itemsize))
    if tb >= batch:
        return int(batch)
    tb = max(8, (tb // 8) * 8)          # keep sublane-aligned
    return int(batch) if tb >= batch else int(tb)


def ldam_loss_mdr(x, target, m_list, weight, *, s=30.0, l=0.0, block_b=None):
    """x: [B, C] logits (any float dtype; cast to f32 in-kernel),
    target: [B] int, m_list/weight: [C] f32. Returns scalar loss (f32)."""
    batch, n_cls = x.shape
    tgt = target.astype(jnp.int32).reshape(batch, 1)
    m_row = m_list.astype(jnp.float32).reshape(1, n_cls)
    w_row = weight.astype(jnp.float32).reshape(1, n_cls)

    if block_b is None:
        block_b = _choose_block_b(batch, n_cls, x.dtype.itemsize)
    n_tiles = pl.cdiv(batch, block_b)

    kernel = functools.partial(
        _ldam_mdr_kernel, s=float(s), l=float(l), batch=batch, block_b=block_b)

    out = pl.pallas_call(
        kernel,
        out_shape=jax.ShapeDtypeStruct((1, 1), jnp.float32),
        grid=(n_tiles,),
        in_specs=[
            pl.BlockSpec((block_b, n_cls), lambda i: (i, 0)),   # x, native dtype
            pl.BlockSpec((block_b, 1), lambda i: (i, 0)),       # target (B,1) int32
            pl.BlockSpec((1, n_cls), lambda i: (0, 0)),         # m_list row (resident)
            pl.BlockSpec((1, n_cls), lambda i: (0, 0)),         # weight row (resident)
        ],
        out_specs=pl.BlockSpec(memory_space=pltpu.MemorySpace.SMEM),
        scratch_shapes=[pltpu.SMEM((3,), jnp.float32)],
        compiler_params=pltpu.CompilerParams(
            dimension_semantics=("arbitrary",),      # reduction into resident accumulators
            vmem_limit_bytes=32 * 1024 * 1024,
        ),
    )(x, tgt, m_row, w_row)
    return out[0, 0]


def _reference(x, target, m_list, weight, s, l):
    # Pure-JAX reference mirroring the PyTorch forward.
    x = x.astype(jnp.float32)
    one_hot = jax.nn.one_hot(target, x.shape[1], dtype=jnp.float32)
    batch_m = (one_hot * m_list[None, :]).sum(-1, keepdims=True)
    output = jnp.where(one_hot > 0, x - batch_m, x)
    scaled = s * output
    logp = jax.nn.log_softmax(scaled, axis=-1)
    ce = -(one_hot * logp).sum(-1)
    w_t = (one_hot * weight[None, :]).sum(-1)
    loss_ce = (w_t * ce).sum() / w_t.sum()
    pred = jnp.argmax(x, axis=1).astype(jnp.float32)
    return loss_ce + (l / 2.0) * (0.5 - pred.mean()) ** 2


if __name__ == "__main__":
    s = 30.0
    l = 0.1
    max_m = 0.5
    C = 16

    # deterministic "parameters" from the module __init__
    cls_num_list = np.array([500, 300, 200, 120, 80, 60, 40, 30,
                             20, 15, 10, 8, 6, 4, 2, 1], dtype=np.float64)
    m_np = 1.0 / np.sqrt(np.sqrt(cls_num_list))
    m_np = m_np * (max_m / np.max(m_np))
    m_list = jnp.asarray(m_np, dtype=jnp.float32)
    weight = jnp.asarray(1.0 + 0.1 * np.arange(C), dtype=jnp.float32)

    key = jax.random.PRNGKey(0)
    k1, k2, k3, k4 = jax.random.split(key, 4)

    # case 1: B=8, single batch tile
    x1 = jax.random.normal(k1, (8, C), dtype=jnp.float32)
    t1 = jax.random.randint(k2, (8,), 0, C, dtype=jnp.int32)
    out1 = ldam_loss_mdr(x1, t1, m_list, weight, s=s, l=l)
    jax.block_until_ready(out1)
    ref1 = _reference(x1, t1, m_list, weight, s, l)
    assert jnp.allclose(out1, ref1, rtol=1e-5, atol=1e-5), (out1, ref1)

    # case 2: B=13 with block_b=8 -> 2 grid steps, padded rows masked on last tile
    x2 = jax.random.normal(k3, (13, C), dtype=jnp.float32)
    t2 = jax.random.randint(k4, (13,), 0, C, dtype=jnp.int32)
    out2 = ldam_loss_mdr(x2, t2, m_list, weight, s=s, l=l, block_b=8)
    jax.block_until_ready(out2)
    ref2 = _reference(x2, t2, m_list, weight, s, l)
    assert jnp.allclose(out2, ref2, rtol=1e-5, atol=1e-5), (out2, ref2)

    # case 3: bf16 logits stay bf16 through HBM (cast to f32 only inside the kernel)
    x3 = x1.astype(jnp.bfloat16)
    out3 = ldam_loss_mdr(x3, t1, m_list, weight, s=s, l=l)
    jax.block_until_ready(out3)
    ref3 = _reference(x3.astype(jnp.float32), t1, m_list, weight, s, l)
    assert jnp.allclose(out3, ref3, rtol=1e-4, atol=1e-4), (out3, ref3)

    print("KERNEL_OK")
</pallas_src>

<mosaic_0001>
module attributes {stable_mosaic.version = 11 : i64} {
  func.func @_ldam_mdr_kernel(%arg0: i32, %arg1: memref<8x16xf32, #tpu.memory_space<vmem>>, %arg2: memref<8x1xi32, #tpu.memory_space<vmem>>, %arg3: memref<1x16xf32, #tpu.memory_space<vmem>>, %arg4: memref<1x16xf32, #tpu.memory_space<vmem>>, %arg5: memref<1x1xf32, #tpu.memory_space<smem>>, %arg6: memref<3xf32, #tpu.memory_space<smem>>) attributes {dimension_semantics = [#tpu.dimension_semantics<arbitrary>], iteration_bounds = array<i64: 1>, scalar_prefetch = 0 : i64, scratch_operands = 1 : i64, tpu.core_type = #tpu.core_type<tc>, window_params = [{transform_indices = @transform_0, window_bounds = array<i64: 8, 16>}, {transform_indices = @transform_1, window_bounds = array<i64: 8, 1>}, {pipeline_mode = #tpu.pipeline_mode<synchronous>, transform_indices = @transform_2, window_bounds = array<i64: 1, 16>}, {pipeline_mode = #tpu.pipeline_mode<synchronous>, transform_indices = @transform_3, window_bounds = array<i64: 1, 16>}, {transform_indices = @transform_4, window_bounds = array<i64: 1, 1>}]} {
    %c0_i32 = arith.constant 0 : i32
    %0 = arith.cmpi eq, %arg0, %c0_i32 : i32
    %1 = arith.extui %0 : i1 to i32
    %c0_i32_0 = arith.constant 0 : i32
    %2 = arith.cmpi ne, %1, %c0_i32_0 : i32
    scf.if %2 {
      %cst_28 = arith.constant 0.000000e+00 : f32
      %c0_29 = arith.constant 0 : index
      %89 = memref.load %arg6[%c0_29] : memref<3xf32, #tpu.memory_space<smem>>
      memref.store %cst_28, %arg6[%c0_29] : memref<3xf32, #tpu.memory_space<smem>>
      %cst_30 = arith.constant 0.000000e+00 : f32
      %c1_31 = arith.constant 1 : index
      %90 = memref.load %arg6[%c1_31] : memref<3xf32, #tpu.memory_space<smem>>
      memref.store %cst_30, %arg6[%c1_31] : memref<3xf32, #tpu.memory_space<smem>>
      %cst_32 = arith.constant 0.000000e+00 : f32
      %c2_33 = arith.constant 2 : index
      %91 = memref.load %arg6[%c2_33] : memref<3xf32, #tpu.memory_space<smem>>
      memref.store %cst_32, %arg6[%c2_33] : memref<3xf32, #tpu.memory_space<smem>>
    } else {
    }
    %c0 = arith.constant 0 : index
    %c0_1 = arith.constant 0 : index
    %3 = vector.load %arg1[%c0, %c0_1] : memref<8x16xf32, #tpu.memory_space<vmem>>, vector<8x16xf32>
    %c0_2 = arith.constant 0 : index
    %c0_3 = arith.constant 0 : index
    %4 = vector.load %arg2[%c0_2, %c0_3] : memref<8x1xi32, #tpu.memory_space<vmem>>, vector<8x1xi32>
    %c0_4 = arith.constant 0 : index
    %c0_5 = arith.constant 0 : index
    %5 = vector.load %arg3[%c0_4, %c0_5] : memref<1x16xf32, #tpu.memory_space<vmem>>, vector<1x16xf32>
    %c0_6 = arith.constant 0 : index
    %c0_7 = arith.constant 0 : index
    %6 = vector.load %arg4[%c0_6, %c0_7] : memref<1x16xf32, #tpu.memory_space<vmem>>, vector<1x16xf32>
    %c8_i32 = arith.constant 8 : i32
    %7 = arith.muli %arg0, %c8_i32 : i32
    %8 = tpu.iota {dimensions = array<i32: 0>} : vector<8x1xi32>
    %9 = vector.broadcast %7 : i32 to vector<8x1xi32>
    %10 = arith.addi %9, %8 : vector<8x1xi32>
    %c8_i32_8 = arith.constant 8 : i32
    %11 = vector.broadcast %c8_i32_8 : i32 to vector<8x1xi32>
    %12 = arith.cmpi slt, %10, %11 : vector<8x1xi32>
    %cst = arith.constant 0.000000e+00 : f32
    %13 = vector.shape_cast %12 : vector<8x1xi1> to vector<8x1xi1>
    %14 = vector.broadcast %13 : vector<8x1xi1> to vector<8x16xi1>
    %15 = vector.broadcast %cst : f32 to vector<8x16xf32>
    %16 = arith.select %14, %3, %15 : vector<8x16xi1>, vector<8x16xf32>
    %17 = tpu.iota {dimensions = array<i32: 1>} : vector<8x16xi32>
    %18 = vector.broadcast %4 : vector<8x1xi32> to vector<8x16xi32>
    %19 = arith.cmpi eq, %17, %18 : vector<8x16xi32>
    %20 = vector.broadcast %12 : vector<8x1xi1> to vector<8x16xi1>
    %21 = arith.andi %19, %20 : vector<8x16xi1>
    %22 = arith.extui %21 : vector<8x16xi1> to vector<8x16xi32>
    %23 = arith.sitofp %22 : vector<8x16xi32> to vector<8x16xf32>
    %24 = arith.mulf %23, %16 : vector<8x16xf32>
    %cst_9 = arith.constant dense<0.000000e+00> : vector<8xf32>
    %25 = vector.multi_reduction <add>, %24, %cst_9 [1] : vector<8x16xf32> to vector<8xf32>
    %26 = vector.shape_cast %25 : vector<8xf32> to vector<8x1xf32>
    %27 = vector.broadcast %5 : vector<1x16xf32> to vector<8x16xf32>
    %28 = arith.mulf %23, %27 : vector<8x16xf32>
    %cst_10 = arith.constant dense<0.000000e+00> : vector<8xf32>
    %29 = vector.multi_reduction <add>, %28, %cst_10 [1] : vector<8x16xf32> to vector<8xf32>
    %30 = vector.shape_cast %29 : vector<8xf32> to vector<8x1xf32>
    %31 = vector.broadcast %6 : vector<1x16xf32> to vector<8x16xf32>
    %32 = arith.mulf %23, %31 : vector<8x16xf32>
    %cst_11 = arith.constant dense<0.000000e+00> : vector<8xf32>
    %33 = vector.multi_reduction <add>, %32, %cst_11 [1] : vector<8x16xf32> to vector<8xf32>
    %34 = vector.shape_cast %33 : vector<8xf32> to vector<8x1xf32>
    %35 = vector.broadcast %30 : vector<8x1xf32> to vector<8x16xf32>
    %36 = arith.mulf %35, %23 : vector<8x16xf32>
    %37 = arith.subf %16, %36 : vector<8x16xf32>
    %cst_12 = arith.constant 3.000000e+01 : f32
    %38 = vector.broadcast %cst_12 : f32 to vector<8x16xf32>
    %39 = arith.mulf %38, %37 : vector<8x16xf32>
    %cst_13 = arith.constant dense<0xFF800000> : vector<8xf32>
    %40 = vector.multi_reduction <maximumf>, %39, %cst_13 [1] : vector<8x16xf32> to vector<8xf32>
    %41 = vector.shape_cast %40 : vector<8xf32> to vector<8x1xf32>
    %42 = vector.broadcast %41 : vector<8x1xf32> to vector<8x16xf32>
    %43 = arith.subf %39, %42 : vector<8x16xf32>
    %44 = math.exp %43 : vector<8x16xf32>
    %cst_14 = arith.constant dense<0.000000e+00> : vector<8xf32>
    %45 = vector.multi_reduction <add>, %44, %cst_14 [1] : vector<8x16xf32> to vector<8xf32>
    %46 = vector.shape_cast %45 : vector<8xf32> to vector<8x1xf32>
    %47 = math.log %46 : vector<8x1xf32>
    %48 = arith.addf %41, %47 : vector<8x1xf32>
    %49 = arith.subf %26, %30 : vector<8x1xf32>
    %cst_15 = arith.constant 3.000000e+01 : f32
    %50 = vector.broadcast %cst_15 : f32 to vector<8x1xf32>
    %51 = arith.mulf %50, %49 : vector<8x1xf32>
    %52 = arith.subf %48, %51 : vector<8x1xf32>
    %cst_16 = arith.constant dense<0xFF800000> : vector<8xf32>
    %53 = vector.multi_reduction <maximumf>, %16, %cst_16 [1] : vector<8x16xf32> to vector<8xf32>
    %54 = vector.shape_cast %53 : vector<8xf32> to vector<8x1xf32>
    %55 = vector.broadcast %54 : vector<8x1xf32> to vector<8x16xf32>
    %56 = arith.cmpf oeq, %16, %55 : vector<8x16xf32>
    %c16_i32 = arith.constant 16 : i32
    %57 = vector.broadcast %c16_i32 : i32 to vector<8x16xi32>
    %58 = arith.select %56, %17, %57 : vector<8x16xi1>, vector<8x16xi32>
    %cst_17 = arith.constant dense<2147483647> : vector<8xi32>
    %59 = vector.multi_reduction <minsi>, %58, %cst_17 [1] : vector<8x16xi32> to vector<8xi32>
    %60 = vector.shape_cast %59 : vector<8xi32> to vector<8x1xi32>
    %c0_i32_18 = arith.constant 0 : i32
    %61 = vector.broadcast %c0_i32_18 : i32 to vector<8x1xi32>
    %62 = arith.select %12, %60, %61 : vector<8x1xi1>, vector<8x1xi32>
    %63 = arith.sitofp %62 : vector<8x1xi32> to vector<8x1xf32>
    %c0_19 = arith.constant 0 : index
    %64 = memref.load %arg6[%c0_19] : memref<3xf32, #tpu.memory_space<smem>>
    %65 = arith.mulf %34, %52 : vector<8x1xf32>
    %66 = vector.shape_cast %65 : vector<8x1xf32> to vector<1x8x1xf32>
    %cst_20 = arith.constant dense<0.000000e+00> : vector<1xf32>
    %67 = vector.multi_reduction <add>, %66, %cst_20 [1, 2] : vector<1x8x1xf32> to vector<1xf32>
    %68 = vector.shape_cast %67 : vector<1xf32> to vector<1x1x1xf32>
    %69 = vector.extract %68[0, 0, 0] : f32 from vector<1x1x1xf32>
    %70 = arith.addf %64, %69 : f32
    %c0_21 = arith.constant 0 : index
    %71 = memref.load %arg6[%c0_21] : memref<3xf32, #tpu.memory_space<smem>>
    memref.store %70, %arg6[%c0_21] : memref<3xf32, #tpu.memory_space<smem>>
    %c1 = arith.constant 1 : index
    %72 = memref.load %arg6[%c1] : memref<3xf32, #tpu.memory_space<smem>>
    %73 = vector.shape_cast %34 : vector<8x1xf32> to vector<1x8x1xf32>
    %cst_22 = arith.constant dense<0.000000e+00> : vector<1xf32>
    %74 = vector.multi_reduction <add>, %73, %cst_22 [1, 2] : vector<1x8x1xf32> to vector<1xf32>
    %75 = vector.shape_cast %74 : vector<1xf32> to vector<1x1x1xf32>
    %76 = vector.extract %75[0, 0, 0] : f32 from vector<1x1x1xf32>
    %77 = arith.addf %72, %76 : f32
    %c1_23 = arith.constant 1 : index
    %78 = memref.load %arg6[%c1_23] : memref<3xf32, #tpu.memory_space<smem>>
    memref.store %77, %arg6[%c1_23] : memref<3xf32, #tpu.memory_space<smem>>
    %c2 = arith.constant 2 : index
    %79 = memref.load %arg6[%c2] : memref<3xf32, #tpu.memory_space<smem>>
    %80 = vector.shape_cast %63 : vector<8x1xf32> to vector<1x8x1xf32>
    %cst_24 = arith.constant dense<0.000000e+00> : vector<1xf32>
    %81 = vector.multi_reduction <add>, %80, %cst_24 [1, 2] : vector<1x8x1xf32> to vector<1xf32>
    %82 = vector.shape_cast %81 : vector<1xf32> to vector<1x1x1xf32>
    %83 = vector.extract %82[0, 0, 0] : f32 from vector<1x1x1xf32>
    %84 = arith.addf %79, %83 : f32
    %c2_25 = arith.constant 2 : index
    %85 = memref.load %arg6[%c2_25] : memref<3xf32, #tpu.memory_space<smem>>
    memref.store %84, %arg6[%c2_25] : memref<3xf32, #tpu.memory_space<smem>>
    %c0_i32_26 = arith.constant 0 : i32
    %86 = arith.cmpi eq, %arg0, %c0_i32_26 : i32
    %87 = arith.extui %86 : i1 to i32
    %c0_i32_27 = arith.constant 0 : i32
    %88 = arith.cmpi ne, %87, %c0_i32_27 : i32
    scf.if %88 {
      %c0_28 = arith.constant 0 : index
      %89 = memref.load %arg6[%c0_28] : memref<3xf32, #tpu.memory_space<smem>>
      %c1_29 = arith.constant 1 : index
      %90 = memref.load %arg6[%c1_29] : memref<3xf32, #tpu.memory_space<smem>>
      %91 = arith.divf %89, %90 : f32
      %c2_30 = arith.constant 2 : index
      %92 = memref.load %arg6[%c2_30] : memref<3xf32, #tpu.memory_space<smem>>
      %cst_31 = arith.constant 8.000000e+00 : f32
      %93 = arith.divf %92, %cst_31 : f32
      %cst_32 = arith.constant 5.000000e-01 : f32
      %94 = arith.subf %cst_32, %93 : f32
      %95 = arith.mulf %94, %94 : f32
      %cst_33 = arith.constant 5.000000e-02 : f32
      %96 = arith.mulf %cst_33, %95 : f32
      %97 = arith.addf %91, %96 : f32
      %c0_34 = arith.constant 0 : index
      %c0_35 = arith.constant 0 : index
      %98 = memref.load %arg5[%c0_34, %c0_35] : memref<1x1xf32, #tpu.memory_space<smem>>
      memref.store %97, %arg5[%c0_34, %c0_35] : memref<1x1xf32, #tpu.memory_space<smem>>
    } else {
    }
    return
  }
  func.func @transform_0(%arg0: i32) -> (i32, i32) {
    %c0_i32 = arith.constant 0 : i32
    %c0_i32_0 = arith.constant 0 : i32
    return %arg0, %c0_i32 : i32, i32
  }
  func.func @transform_1(%arg0: i32) -> (i32, i32) {
    %c0_i32 = arith.constant 0 : i32
    %c0_i32_0 = arith.constant 0 : i32
    return %arg0, %c0_i32 : i32, i32
  }
  func.func @transform_2(%arg0: i32) -> (i32, i32) {
    %c0_i32 = arith.constant 0 : i32
    %c0_i32_0 = arith.constant 0 : i32
    %c0_i32_1 = arith.constant 0 : i32
    return %c0_i32, %c0_i32_0 : i32, i32
  }
  func.func @transform_3(%arg0: i32) -> (i32, i32) {
    %c0_i32 = arith.constant 0 : i32
    %c0_i32_0 = arith.constant 0 : i32
    %c0_i32_1 = arith.constant 0 : i32
    return %c0_i32, %c0_i32_0 : i32, i32
  }
  func.func @transform_4(%arg0: i32) -> (i32, i32) {
    %c0_i32 = arith.constant 0 : i32
    %c0_i32_0 = arith.constant 0 : i32
    %c0_i32_1 = arith.constant 0 : i32
    return %c0_i32, %c0_i32_0 : i32, i32
  }
}

</mosaic_0001>

<llo_original>
// kernel: tpu_custom_call.1
$region0: #{tpu_custom_call.1}
  #allocation0 [shape = 'u32[]', space=smem, size = 0x4, offset = 0x4, fixed_abs, tag = 'smem constant byte address 0x4 - core index']
  #allocation1 [shape = 'u32[72,128]{1,0:T(1,128)}', space=vmem, size = 0x9000, scoped, tag = 'internal scratch']
  #allocation2 [shape = 'f32[3]{0:T(128)}', space=smem, size = 0x200, scoped, tag = 'scratch operand']
  %s0 = inlined_call_operand.vmem [shape: f32[8,16], index: 0, kind: input, shape index: {}]
  %s1 = inlined_call_operand.vmem [shape: s32[8,1], index: 1, kind: input, shape index: {}]
  %s2 = inlined_call_operand.vmem [shape: f32[1,16], index: 2, kind: input, shape index: {}]
  %s3 = inlined_call_operand.vmem [shape: f32[1,16], index: 3, kind: input, shape index: {}]
  %s4 = inlined_call_operand.hbm [shape: f32[1,1], index: 4, kind: output, shape index: {}]
  %s5 = sld [smem:[#allocation0]]
  $region34: #{tpu_custom_call.1} parent=0
    _
  %s7 = ssub.s32 1, %s5
  %s8 = scalar_select 0, %s7, %s5
  $region1: #{tpu_custom_call.1} parent=0
    #allocation3 [shape = 'u8[512]{0}', space=smem, size = 0x200, scoped, tag = 'output window, operand 0, single buffered']
    #allocation4 [shape = 's32[1]{0}', space=sflag, size = 0x4, scoped, tag = 'scoped memory for tpu_custom_call.1']
    %9 = vsyncpa [#allocation4], 0
    // Predicated region
    $region2: #{tpu_custom_call.1} parent=1 // pred_check
      _
    $region3: #{tpu_custom_call.1} parent=1 // pred_check_branch
      %11 = sbr.rel (0) target = $region5
    $region4: #{tpu_custom_call.1} parent=1 // pred_region
      _
    $region5: #{tpu_custom_call.1} parent=1 // pred_fallthru
      _
    // Predicated region
    $region6: #{tpu_custom_call.1} parent=1 // pred_check
      _
    $region7: #{tpu_custom_call.1} parent=1 // pred_check_branch
      %13 = sbr.rel (0) target = $region9
    $region8: #{tpu_custom_call.1} parent=1 // pred_region
      _
    $region9: #{tpu_custom_call.1} parent=1 // pred_fallthru
      _
    // Predicated region
    $region10: #{tpu_custom_call.1} parent=1 // pred_check
      _
    $region11: #{tpu_custom_call.1} parent=1 // pred_check_branch
      %15 = sbr.rel (0) target = $region13
    $region12: #{tpu_custom_call.1} parent=1 // pred_region
      _
    $region13: #{tpu_custom_call.1} parent=1 // pred_fallthru
      _
    // Predicated region
    $region14: #{tpu_custom_call.1} parent=1 // pred_check
      _
    $region15: #{tpu_custom_call.1} parent=1 // pred_check_branch
      %17 = sbr.rel (0) target = $region17
    $region16: #{tpu_custom_call.1} parent=1 // pred_region
      _
    $region17: #{tpu_custom_call.1} parent=1 // pred_fallthru
      _
    %p18 = scmp.eq.s32.totalorder 0, 0
    // Predicated region
    $region18: #{tpu_custom_call.1} parent=1 // pred_check
      %p19 = pneg %p18
    $region19: #{tpu_custom_call.1} parent=1 // pred_check_branch
      %21 = sbr.rel (%p19) target = $region21
    $region20: #{tpu_custom_call.1} parent=1 // pred_region
      %s22 = scalar_lea.smem [#allocation2], 0
      %23 = sst [smem:[%s22]] 0.0
      %s24 = scalar_lea.smem [#allocation2], 1
      %25 = sst [smem:[%s24]] 0.0
      %s26 = scalar_lea.smem [#allocation2], 2
      %27 = sst [smem:[%s26]] 0.0
    $region21: #{tpu_custom_call.1} parent=1 // pred_fallthru
      _
    %v28 = vld [vmem:[%s0] sm:$0xff]
    %v29 = vld [vmem:[%s1] sm:$0xff]
    %v30 = vld [vmem:[%s2] sm:$0x1]
    %v31 = vld [vmem:[%s3] sm:$0x1]
    %s32 = smul.u32 0, 8
    %v33 = vlaneseq
    %v34 = vshrl.u32 %v33, 7
    %v35 = vstv %s32
    %v36 = vadd.s32 %v35, %v34
    %vm37 = vcmp.lt.s32.totalorder %v36, 8
    %v38 = vsel %vm37, 1, 0
    %vm39 = vcmp.eq.s32.totalorder %v38, 1
    %v40 = vsel %vm39, %v28, 0.0
    %v41 = vlaneseq
    %v42 = vand.u32 %v41, 127
    %43 = vset.pattern.permute.xlu0 0
    %44 = vperm.xlu0 %43, %v29
    %v45 = vpop.permute.xlu0 %44
    %vm46 = vcmp.eq.s32.totalorder %v42, %v45
    %vm47 = vmand %vm46, %vm39
    %v48 = vsel %vm47, 1, 0
    %v49 = vcvt.s32.f32 %v48
    %v50 = vmul.f32 %v49, %v40
    %vm51 = vcmask 130048
    %v52 = vsel %vm51, %v50, 0.0
    %53 = vadd.xlane.f32.xlu0 %v52
    %v54 = vpop.xlane.xlu0 %53
    %v56 = vperm.slane %v30, 0
    %v58 = vmul.f32 %v49, %v56
    %v59 = vsel %vm51, %v58, 0.0
    %60 = vadd.xlane.f32.xlu0 %v59
    %v61 = vpop.xlane.xlu0 %60
    %v63 = vperm.slane %v31, 0
    %v65 = vmul.f32 %v49, %v63
    %v66 = vsel %vm51, %v65, 0.0
    %67 = vadd.xlane.f32.xlu0 %v66
    %v68 = vpop.xlane.xlu0 %67
    %v69 = vmul.f32 %v61, %v49
    %v70 = vsub.f32 %v40, %v69
    %v71 = vmul.f32 %v70, 30.0
    %v72 = vsel %vm51, %v71, -inf
    %73 = vmax.xlane.f32.xlu0 %v72
    %v74 = vpop.xlane.xlu0 %73
    %v75 = vsub.f32 %v71, %v74
    %v76 = vmul.f32 %v75, 1.442695
    %v77 = vpow.pop %v76
    %v78 = vsel %vm51, %v77, 0.0
    %79 = vadd.xlane.f32.xlu0 %v78
    %v80 = vpop.xlane.xlu0 %79
    %v81 = vlog2.pop %v80
    %v82 = vmul.f32 %v81, 0.6931472
    %v83 = vadd.f32 %v74, %v82
    %v84 = vsub.f32 %v54, %v61
    %v85 = vmul.f32 %v84, 30.0
    %v86 = vsub.f32 %v83, %v85
    %v87 = vsel %vm51, %v40, -inf
    %88 = vmax.xlane.f32.xlu0 %v87
    %v89 = vpop.xlane.xlu0 %88
    %vm90 = vcmp.eq.f32.partialorder %v40, %v89
    %v91 = vsel %vm90, %v42, 16
    %v92 = vsel %vm51, %v91, 2147483647
    %v93 = vand.u32 %v92, 65535
    %v94 = vshra.s32 %v92, 16
    %v95 = vcvt.s32.f32 %v93
    %v96 = vcvt.s32.f32 %v94
    %97 = vmin.xlane.f32.xlu0 %v96
    %v98 = vpop.xlane.xlu0 %97
    %vm99 = vcmp.eq.f32.partialorder %v96, %v98
    %v100 = vsel %vm99, %v95, inf
    %101 = vmin.xlane.f32.xlu0 %v100
    %v102 = vpop.xlane.xlu0 %101
    %v103 = vcvt.f32.s32 %v102
    %v104 = vcvt.f32.s32 %v98
    %v105 = vshll.u32 %v104, 16
    %v106 = vadd.s32 %v105, %v103
    %v107 = vsel %vm37, %v106, 0
    %v108 = vcvt.s32.f32 %v107
    %s109 = sld [smem:[#allocation2]]
    %v110 = vmul.f32 %v68, %v86
    %vm111 = vcmask 7168
    %v112 = vsel %vm111, %v110, 0.0
    %113 = vadd.xlane.f32.xlu0 %v112
    %v114 = vpop.xlane.xlu0 %113
    %v115 = vrot.slane %v114, 4
    %v116 = vadd.f32 %v114, %v115
    %v117 = vrot.slane %v116, 2
    %v118 = vadd.f32 %v116, %v117
    %v119 = vrot.slane %v118, 1
    %v120 = vadd.f32 %v118, %v119
    %s121 = vtos %v120
    %s122 = sadd.f32 %s109, %s121
    %s123 = scalar_lea.smem [#allocation2], 0
    %124 = sst [smem:[%s123]] %s122
    %s125 = sld [smem:[#allocation2 + $0x1]]
    %v126 = vsel %vm111, %v68, 0.0
    %127 = vadd.xlane.f32.xlu0 %v126
    %v128 = vpop.xlane.xlu0 %127
    %v129 = vrot.slane %v128, 4
    %v130 = vadd.f32 %v128, %v129
    %v131 = vrot.slane %v130, 2
    %v132 = vadd.f32 %v130, %v131
    %v133 = vrot.slane %v132, 1
    %v134 = vadd.f32 %v132, %v133
    %s135 = vtos %v134
    %s136 = sadd.f32 %s125, %s135
    %s137 = scalar_lea.smem [#allocation2], 1
    %138 = sst [smem:[%s137]] %s136
    %s139 = sld [smem:[#allocation2 + $0x2]]
    %v140 = vsel %vm111, %v108, 0.0
    %141 = vadd.xlane.f32.xlu0 %v140
    %v142 = vpop.xlane.xlu0 %141
    %v143 = vrot.slane %v142, 4
    %v144 = vadd.f32 %v142, %v143
    %v145 = vrot.slane %v144, 2
    %v146 = vadd.f32 %v144, %v145
    %v147 = vrot.slane %v146, 1
    %v148 = vadd.f32 %v146, %v147
    %s149 = vtos %v148
    %s150 = sadd.f32 %s139, %s149
    %s151 = scalar_lea.smem [#allocation2], 2
    %152 = sst [smem:[%s151]] %s150
    // Predicated region
    $region22: #{tpu_custom_call.1} parent=1 // pred_check
      %p153 = pneg %p18
    $region23: #{tpu_custom_call.1} parent=1 // pred_check_branch
      %155 = sbr.rel (%p153) target = $region25
    $region24: #{tpu_custom_call.1} parent=1 // pred_region
      %s156 = sld [smem:[#allocation2]]
      %s157 = sld [smem:[#allocation2 + $0x1]]
      %v158 = vstv %s157
      %v159 = vrcp.pop %v158
      %v160 = vmul.f32 %v158, %v159
      %v161 = vsub.f32 1.0, %v160
      %v162 = vmul.f32 %v159, %v161
      %v163 = vadd.f32 %v159, %v162
      %vm164 = vweird.f32 %v158
      %vm165 = vweird.f32 %v159
      %vm166 = vmor %vm164, %vm165
      %v167 = vsel %vm166, %v159, %v163
      %v168 = vand.u32 2147483647, %v158
      %vm169 = vcmp.eq.f32.partialorder %v168, 8.507059e+37
      %v170 = vand.u32 %v158, 2147483648
      %v171 = vor.u32 1.1754944e-38, %v170
      %v172 = vsel %vm169, %v171, %v167
      %s173 = vtos %v172
      %s174 = smul.f32 %s156, %s173
      %s175 = sld [smem:[#allocation2 + $0x2]]
      %v176 = vrcp.pop 8.0
      %v177 = vmul.f32 8.0, %v176
      %v178 = vsub.f32 1.0, %v177
      %v179 = vmul.f32 %v176, %v178
      %v180 = vadd.f32 %v176, %v179
      %vm181 = vweird.f32 %v176
      %v182 = vsel %vm181, %v176, %v180
      %s183 = vtos %v182
      %s184 = smul.f32 %s175, %s183
      %s185 = ssub.f32 0.5, %s184
      %s186 = smul.f32 %s185, %s185
      %s187 = smul.f32 %s186, 0.05
      %s188 = sadd.f32 %s174, %s187
      %s189 = scalar_lea.smem [#allocation3], 0
      %190 = sst [smem:[%s189]] %s188
    $region25: #{tpu_custom_call.1} parent=1 // pred_fallthru
      _
    // Predicated region
    $region26: #{tpu_custom_call.1} parent=1 // pred_check
      _
    $region27: #{tpu_custom_call.1} parent=1 // pred_check_branch
      %192 = sbr.rel (0) target = $region29
    $region28: #{tpu_custom_call.1} parent=1 // pred_region
      %194 = vsyncadd [#allocation4], 0
      %s196 = sshll.u32 %s4, 4
      %s197 = int_to_ptr.hbm [resolvable:$true] %s196
      %199 = dma.smem_to_hbm [#allocation3], 16, %s197, [#allocation4]
    $region29: #{tpu_custom_call.1} parent=1 // pred_fallthru
      _
    // Predicated region
    $region30: #{tpu_custom_call.1} parent=1 // pred_check
      _
    $region31: #{tpu_custom_call.1} parent=1 // pred_check_branch
      %201 = sbr.rel (0) target = $region33
    $region32: #{tpu_custom_call.1} parent=1 // pred_region
      %203 = dma.done [#allocation4], 16
    $region33: #{tpu_custom_call.1} parent=1 // pred_fallthru
      _
    %204 = sfence
    %205 = vsyncpa [#allocation4], 1

</llo_original>
